<compile_context>
chip_gen: v5e
topology: v5e:2x2
jax: 0.10.0
libtpu: 0.0.40
codegen_flags: <defaults>
</compile_context>

<pallas_src>
import functools
import math

import jax
import jax.numpy as jnp
from jax.experimental import pallas as pl
from jax.experimental.pallas import tpu as pltpu


def _self_attention_kernel(x_ref, w_in_ref, w_out_ref, b_out_ref, o_ref,
                           attn_ref, *, n_heads: int, compute_dtype):
    Bt, S, C = x_ref.shape
    H = n_heads
    Dh = C // H
    scale = 1.0 / math.sqrt(Dh)

    # ---- QKV projection over flattened tokens: (Bt*S, C) @ (C, 3C) on the MXU
    x2 = x_ref[...].reshape(Bt * S, C).astype(compute_dtype)
    w_in = w_in_ref[...].astype(compute_dtype)
    qkv = jnp.dot(x2, w_in, preferred_element_type=jnp.float32)   # (Bt*S, 3C) f32

    # Split once into Q/K/V slabs.  Fold the softmax scale into Q here: one
    # multiply over (Bt*S, C) instead of scaling every (Bt, S, S) score tile.
    q_all = qkv[:, 0 * C:1 * C] * scale
    k_all = qkv[:, 1 * C:2 * C]
    v_all = qkv[:, 2 * C:3 * C]

    # ---- per-head attention, batched over the whole batch tile -------------
    # Heads stay a short static loop (H is small).  Each head's matmuls are
    # batched over Bt via einsum with a leading batch dim (no transposes, no
    # k.T); results go straight into the VMEM scratch slab so the output
    # projection below is one full-width matmul.
    for h in range(H):
        lo = h * Dh
        qh = q_all[:, lo:lo + Dh].reshape(Bt, S, Dh).astype(compute_dtype)
        kh = k_all[:, lo:lo + Dh].reshape(Bt, S, Dh).astype(compute_dtype)
        vh = v_all[:, lo:lo + Dh].reshape(Bt, S, Dh).astype(compute_dtype)

        # Contract on the shared last dim -> no explicit transpose of k.
        s = jnp.einsum('bqd,bkd->bqk', qh, kh,
                       preferred_element_type=jnp.float32)        # (Bt, S, S)
        s = s - jnp.max(s, axis=-1, keepdims=True)
        p = jnp.exp(s)
        p = p * pl.reciprocal(jnp.sum(p, axis=-1, keepdims=True), approx=True)

        oh = jnp.einsum('bqk,bkd->bqd', p.astype(compute_dtype), vh,
                        preferred_element_type=jnp.float32)       # (Bt, S, Dh)
        attn_ref[:, lo:lo + Dh] = oh.reshape(Bt * S, Dh)

    # ---- output projection over flattened tokens (with bias) ----------------
    attn = attn_ref[...].astype(compute_dtype)
    w_out = w_out_ref[...].astype(compute_dtype)
    out = jnp.dot(attn, w_out, preferred_element_type=jnp.float32)  # (Bt*S, C)
    out = out + b_out_ref[...]                                      # (1, C) broadcast
    o_ref[...] = out.reshape(Bt, S, C).astype(o_ref.dtype)


def self_attention(x, w_in_t, w_out_t, b_out, *, n_heads: int,
                   block_b: int | None = None, compute_dtype=None):
    B, S, C = x.shape
    assert C % n_heads == 0
    if compute_dtype is None:
        # Use jnp.bfloat16 here on v6e/v7x for native-MXU matmul throughput.
        compute_dtype = x.dtype
    if block_b is None:
        # Target ~256 projection rows per grid step; must divide B.
        target = max(1, 256 // S)
        block_b = 1
        for d in range(1, B + 1):
            if B % d == 0 and d <= target:
                block_b = d
    assert B % block_b == 0

    b_out_2d = b_out.reshape(1, C).astype(jnp.float32)

    kernel = functools.partial(_self_attention_kernel,
                               n_heads=n_heads, compute_dtype=compute_dtype)
    return pl.pallas_call(
        kernel,
        out_shape=jax.ShapeDtypeStruct((B, S, C), x.dtype),
        grid_spec=pltpu.PrefetchScalarGridSpec(
            num_scalar_prefetch=0,
            grid=(B // block_b,),
            in_specs=[
                pl.BlockSpec((block_b, S, C), lambda b: (b, 0, 0)),  # x tile
                pl.BlockSpec((C, 3 * C), lambda b: (0, 0)),          # in_proj.weight.T
                pl.BlockSpec((C, C), lambda b: (0, 0)),              # out_proj.weight.T
                pl.BlockSpec((1, C), lambda b: (0, 0)),              # out_proj.bias
            ],
            out_specs=pl.BlockSpec((block_b, S, C), lambda b: (b, 0, 0)),
            scratch_shapes=[pltpu.VMEM((block_b * S, C), jnp.float32)],
        ),
        compiler_params=pltpu.CompilerParams(
            dimension_semantics=("parallel",)),
    )(x, w_in_t, w_out_t, b_out_2d)


def self_attention_reference(x, w_in_t, w_out_t, b_out, *, n_heads: int):
    """Pure-JAX reference mirroring the PyTorch forward exactly."""
    B, S, C = x.shape
    dh = C // n_heads
    qkv = x @ w_in_t                                # (B, S, 3C)
    q, k, v = jnp.split(qkv, 3, axis=-1)

    def heads(t):
        return t.reshape(B, S, n_heads, dh).transpose(0, 2, 1, 3)  # (B, H, S, Dh)

    q, k, v = map(heads, (q, k, v))
    scores = jnp.einsum("bhqd,bhkd->bhqk", q, k) / math.sqrt(dh)
    p = jax.nn.softmax(scores, axis=-1)
    out = jnp.einsum("bhqk,bhkd->bhqd", p, v)
    out = out.transpose(0, 2, 1, 3).reshape(B, S, C)
    return out @ w_out_t + b_out


if __name__ == "__main__":
    B, S, C = 2, 8, 32
    N_HEADS = 4

    key = jax.random.PRNGKey(0)
    kx, kwi, kwo, kbo = jax.random.split(key, 4)

    x = jax.random.normal(kx, (B, S, C), dtype=jnp.float32)
    # Parameters match nn.Linear(C, 3C, bias=False) / nn.Linear(C, C),
    # stored pre-transposed for the kernel.
    w_in_t = jax.random.normal(kwi, (C, 3 * C), dtype=jnp.float32) * (1.0 / math.sqrt(C))
    w_out_t = jax.random.normal(kwo, (C, C), dtype=jnp.float32) * (1.0 / math.sqrt(C))
    b_out = jax.random.normal(kbo, (C,), dtype=jnp.float32) * 0.01

    out = self_attention(x, w_in_t, w_out_t, b_out, n_heads=N_HEADS)
    out = jax.block_until_ready(out)

    ref = self_attention_reference(x, w_in_t, w_out_t, b_out, n_heads=N_HEADS)
    assert out.shape == (B, S, C)
    # Tolerance leaves headroom for the EUP approximate reciprocal in softmax;
    # real bugs (wrong head slicing, wrong packing) produce O(1) errors.
    assert jnp.allclose(out, ref, atol=5e-3, rtol=5e-3), "mismatch vs reference"

    print("KERNEL_OK")
</pallas_src>

<mosaic_0001>
module attributes {stable_mosaic.version = 11 : i64} {
  func.func @_self_attention_kernel(%arg0: i32, %arg1: memref<2x8x32xf32, #tpu.memory_space<vmem>>, %arg2: memref<32x96xf32, #tpu.memory_space<vmem>>, %arg3: memref<32x32xf32, #tpu.memory_space<vmem>>, %arg4: memref<1x32xf32, #tpu.memory_space<vmem>>, %arg5: memref<2x8x32xf32, #tpu.memory_space<vmem>>, %arg6: memref<16x32xf32, #tpu.memory_space<vmem>>) attributes {dimension_semantics = [#tpu.dimension_semantics<parallel>], iteration_bounds = array<i64: 1>, scalar_prefetch = 0 : i64, scratch_operands = 1 : i64, tpu.core_type = #tpu.core_type<tc>, window_params = [{transform_indices = @transform_0, window_bounds = array<i64: 2, 8, 32>}, {pipeline_mode = #tpu.pipeline_mode<synchronous>, transform_indices = @transform_1, window_bounds = array<i64: 32, 96>}, {pipeline_mode = #tpu.pipeline_mode<synchronous>, transform_indices = @transform_2, window_bounds = array<i64: 32, 32>}, {pipeline_mode = #tpu.pipeline_mode<synchronous>, transform_indices = @transform_3, window_bounds = array<i64: 1, 32>}, {transform_indices = @transform_4, window_bounds = array<i64: 2, 8, 32>}]} {
    %c0 = arith.constant 0 : index
    %c0_0 = arith.constant 0 : index
    %c0_1 = arith.constant 0 : index
    %0 = vector.load %arg1[%c0, %c0_0, %c0_1] : memref<2x8x32xf32, #tpu.memory_space<vmem>>, vector<2x8x32xf32>
    %1 = vector.shape_cast %0 : vector<2x8x32xf32> to vector<16x32xf32>
    %c0_2 = arith.constant 0 : index
    %c0_3 = arith.constant 0 : index
    %2 = vector.load %arg2[%c0_2, %c0_3] : memref<32x96xf32, #tpu.memory_space<vmem>>, vector<32x96xf32>
    %cst = arith.constant dense<0.000000e+00> : vector<16x96xf32>
    %3 = tpu.matmul %1, %2, %cst {dimension_numbers = #tpu.dot_dimension_numbers<[1], [0], [0], [1], [0, 0, 1, 1], [], []>} : vector<16x32xf32>, vector<32x96xf32>, vector<16x96xf32> -> vector<16x96xf32>
    %4 = vector.extract_strided_slice %3 {offsets = [0, 0], sizes = [16, 32], strides = [1, 1]} : vector<16x96xf32> to vector<16x32xf32>
    %cst_4 = arith.constant 0.353553385 : f32
    %5 = vector.broadcast %cst_4 : f32 to vector<16x32xf32>
    %6 = arith.mulf %4, %5 : vector<16x32xf32>
    %7 = vector.extract_strided_slice %3 {offsets = [0, 32], sizes = [16, 32], strides = [1, 1]} : vector<16x96xf32> to vector<16x32xf32>
    %8 = vector.extract_strided_slice %3 {offsets = [0, 64], sizes = [16, 32], strides = [1, 1]} : vector<16x96xf32> to vector<16x32xf32>
    %9 = vector.extract_strided_slice %6 {offsets = [0, 0], sizes = [16, 8], strides = [1, 1]} : vector<16x32xf32> to vector<16x8xf32>
    %10 = vector.shape_cast %9 : vector<16x8xf32> to vector<2x8x8xf32>
    %11 = vector.extract_strided_slice %7 {offsets = [0, 0], sizes = [16, 8], strides = [1, 1]} : vector<16x32xf32> to vector<16x8xf32>
    %12 = vector.shape_cast %11 : vector<16x8xf32> to vector<2x8x8xf32>
    %13 = vector.extract_strided_slice %8 {offsets = [0, 0], sizes = [16, 8], strides = [1, 1]} : vector<16x32xf32> to vector<16x8xf32>
    %14 = vector.shape_cast %13 : vector<16x8xf32> to vector<2x8x8xf32>
    "tpu.trace_start"() <{level = 10 : i32, message = "bqd,bkd->bqk"}> : () -> ()
    %cst_5 = arith.constant dense<0.000000e+00> : vector<2x8x8xf32>
    %15 = tpu.matmul %10, %12, %cst_5 {dimension_numbers = #tpu.dot_dimension_numbers<[2], [2], [1], [1], [0, 0, 0, 1, 1, 1], [0], [0]>} : vector<2x8x8xf32>, vector<2x8x8xf32>, vector<2x8x8xf32> -> vector<2x8x8xf32>
    "tpu.trace_stop"() : () -> ()
    %cst_6 = arith.constant dense<0xFF800000> : vector<2x8xf32>
    %16 = vector.multi_reduction <maximumf>, %15, %cst_6 [2] : vector<2x8x8xf32> to vector<2x8xf32>
    %17 = vector.shape_cast %16 : vector<2x8xf32> to vector<2x8x1xf32>
    %18 = vector.broadcast %17 : vector<2x8x1xf32> to vector<2x8x8xf32>
    %19 = arith.subf %15, %18 : vector<2x8x8xf32>
    %20 = math.exp %19 : vector<2x8x8xf32>
    %cst_7 = arith.constant dense<0.000000e+00> : vector<2x8xf32>
    %21 = vector.multi_reduction <add>, %20, %cst_7 [2] : vector<2x8x8xf32> to vector<2x8xf32>
    %22 = vector.shape_cast %21 : vector<2x8xf32> to vector<2x8x1xf32>
    %23 = tpu.reciprocal %22 {approx = true} : vector<2x8x1xf32> -> vector<2x8x1xf32>
    %24 = vector.broadcast %23 : vector<2x8x1xf32> to vector<2x8x8xf32>
    %25 = arith.mulf %20, %24 : vector<2x8x8xf32>
    "tpu.trace_start"() <{level = 10 : i32, message = "bqk,bkd->bqd"}> : () -> ()
    %cst_8 = arith.constant dense<0.000000e+00> : vector<2x8x8xf32>
    %26 = tpu.matmul %25, %14, %cst_8 {dimension_numbers = #tpu.dot_dimension_numbers<[2], [1], [1], [2], [0, 0, 0, 1, 1, 2], [0], [0]>} : vector<2x8x8xf32>, vector<2x8x8xf32>, vector<2x8x8xf32> -> vector<2x8x8xf32>
    "tpu.trace_stop"() : () -> ()
    %27 = vector.shape_cast %26 : vector<2x8x8xf32> to vector<16x8xf32>
    %c0_9 = arith.constant 0 : index
    %c0_10 = arith.constant 0 : index
    %28 = vector.load %arg6[%c0_9, %c0_10] : memref<16x32xf32, #tpu.memory_space<vmem>>, vector<16x8xf32>
    tpu.vector_store %arg6[%c0_9, %c0_10], %27 {strides = array<i32>} : memref<16x32xf32, #tpu.memory_space<vmem>>, vector<16x8xf32>,
    %29 = vector.extract_strided_slice %6 {offsets = [0, 8], sizes = [16, 8], strides = [1, 1]} : vector<16x32xf32> to vector<16x8xf32>
    %30 = vector.shape_cast %29 : vector<16x8xf32> to vector<2x8x8xf32>
    %31 = vector.extract_strided_slice %7 {offsets = [0, 8], sizes = [16, 8], strides = [1, 1]} : vector<16x32xf32> to vector<16x8xf32>
    %32 = vector.shape_cast %31 : vector<16x8xf32> to vector<2x8x8xf32>
    %33 = vector.extract_strided_slice %8 {offsets = [0, 8], sizes = [16, 8], strides = [1, 1]} : vector<16x32xf32> to vector<16x8xf32>
    %34 = vector.shape_cast %33 : vector<16x8xf32> to vector<2x8x8xf32>
    "tpu.trace_start"() <{level = 10 : i32, message = "bqd,bkd->bqk"}> : () -> ()
    %cst_11 = arith.constant dense<0.000000e+00> : vector<2x8x8xf32>
    %35 = tpu.matmul %30, %32, %cst_11 {dimension_numbers = #tpu.dot_dimension_numbers<[2], [2], [1], [1], [0, 0, 0, 1, 1, 1], [0], [0]>} : vector<2x8x8xf32>, vector<2x8x8xf32>, vector<2x8x8xf32> -> vector<2x8x8xf32>
    "tpu.trace_stop"() : () -> ()
    %cst_12 = arith.constant dense<0xFF800000> : vector<2x8xf32>
    %36 = vector.multi_reduction <maximumf>, %35, %cst_12 [2] : vector<2x8x8xf32> to vector<2x8xf32>
    %37 = vector.shape_cast %36 : vector<2x8xf32> to vector<2x8x1xf32>
    %38 = vector.broadcast %37 : vector<2x8x1xf32> to vector<2x8x8xf32>
    %39 = arith.subf %35, %38 : vector<2x8x8xf32>
    %40 = math.exp %39 : vector<2x8x8xf32>
    %cst_13 = arith.constant dense<0.000000e+00> : vector<2x8xf32>
    %41 = vector.multi_reduction <add>, %40, %cst_13 [2] : vector<2x8x8xf32> to vector<2x8xf32>
    %42 = vector.shape_cast %41 : vector<2x8xf32> to vector<2x8x1xf32>
    %43 = tpu.reciprocal %42 {approx = true} : vector<2x8x1xf32> -> vector<2x8x1xf32>
    %44 = vector.broadcast %43 : vector<2x8x1xf32> to vector<2x8x8xf32>
    %45 = arith.mulf %40, %44 : vector<2x8x8xf32>
    "tpu.trace_start"() <{level = 10 : i32, message = "bqk,bkd->bqd"}> : () -> ()
    %cst_14 = arith.constant dense<0.000000e+00> : vector<2x8x8xf32>
    %46 = tpu.matmul %45, %34, %cst_14 {dimension_numbers = #tpu.dot_dimension_numbers<[2], [1], [1], [2], [0, 0, 0, 1, 1, 2], [0], [0]>} : vector<2x8x8xf32>, vector<2x8x8xf32>, vector<2x8x8xf32> -> vector<2x8x8xf32>
    "tpu.trace_stop"() : () -> ()
    %47 = vector.shape_cast %46 : vector<2x8x8xf32> to vector<16x8xf32>
    %c0_15 = arith.constant 0 : index
    %c8 = arith.constant 8 : index
    %48 = vector.load %arg6[%c0_15, %c8] : memref<16x32xf32, #tpu.memory_space<vmem>>, vector<16x8xf32>
    tpu.vector_store %arg6[%c0_15, %c8], %47 {strides = array<i32>} : memref<16x32xf32, #tpu.memory_space<vmem>>, vector<16x8xf32>,
    %49 = vector.extract_strided_slice %6 {offsets = [0, 16], sizes = [16, 8], strides = [1, 1]} : vector<16x32xf32> to vector<16x8xf32>
    %50 = vector.shape_cast %49 : vector<16x8xf32> to vector<2x8x8xf32>
    %51 = vector.extract_strided_slice %7 {offsets = [0, 16], sizes = [16, 8], strides = [1, 1]} : vector<16x32xf32> to vector<16x8xf32>
    %52 = vector.shape_cast %51 : vector<16x8xf32> to vector<2x8x8xf32>
    %53 = vector.extract_strided_slice %8 {offsets = [0, 16], sizes = [16, 8], strides = [1, 1]} : vector<16x32xf32> to vector<16x8xf32>
    %54 = vector.shape_cast %53 : vector<16x8xf32> to vector<2x8x8xf32>
    "tpu.trace_start"() <{level = 10 : i32, message = "bqd,bkd->bqk"}> : () -> ()
    %cst_16 = arith.constant dense<0.000000e+00> : vector<2x8x8xf32>
    %55 = tpu.matmul %50, %52, %cst_16 {dimension_numbers = #tpu.dot_dimension_numbers<[2], [2], [1], [1], [0, 0, 0, 1, 1, 1], [0], [0]>} : vector<2x8x8xf32>, vector<2x8x8xf32>, vector<2x8x8xf32> -> vector<2x8x8xf32>
    "tpu.trace_stop"() : () -> ()
    %cst_17 = arith.constant dense<0xFF800000> : vector<2x8xf32>
    %56 = vector.multi_reduction <maximumf>, %55, %cst_17 [2] : vector<2x8x8xf32> to vector<2x8xf32>
    %57 = vector.shape_cast %56 : vector<2x8xf32> to vector<2x8x1xf32>
    %58 = vector.broadcast %57 : vector<2x8x1xf32> to vector<2x8x8xf32>
    %59 = arith.subf %55, %58 : vector<2x8x8xf32>
    %60 = math.exp %59 : vector<2x8x8xf32>
    %cst_18 = arith.constant dense<0.000000e+00> : vector<2x8xf32>
    %61 = vector.multi_reduction <add>, %60, %cst_18 [2] : vector<2x8x8xf32> to vector<2x8xf32>
    %62 = vector.shape_cast %61 : vector<2x8xf32> to vector<2x8x1xf32>
    %63 = tpu.reciprocal %62 {approx = true} : vector<2x8x1xf32> -> vector<2x8x1xf32>
    %64 = vector.broadcast %63 : vector<2x8x1xf32> to vector<2x8x8xf32>
    %65 = arith.mulf %60, %64 : vector<2x8x8xf32>
    "tpu.trace_start"() <{level = 10 : i32, message = "bqk,bkd->bqd"}> : () -> ()
    %cst_19 = arith.constant dense<0.000000e+00> : vector<2x8x8xf32>
    %66 = tpu.matmul %65, %54, %cst_19 {dimension_numbers = #tpu.dot_dimension_numbers<[2], [1], [1], [2], [0, 0, 0, 1, 1, 2], [0], [0]>} : vector<2x8x8xf32>, vector<2x8x8xf32>, vector<2x8x8xf32> -> vector<2x8x8xf32>
    "tpu.trace_stop"() : () -> ()
    %67 = vector.shape_cast %66 : vector<2x8x8xf32> to vector<16x8xf32>
    %c0_20 = arith.constant 0 : index
    %c16 = arith.constant 16 : index
    %68 = vector.load %arg6[%c0_20, %c16] : memref<16x32xf32, #tpu.memory_space<vmem>>, vector<16x8xf32>
    tpu.vector_store %arg6[%c0_20, %c16], %67 {strides = array<i32>} : memref<16x32xf32, #tpu.memory_space<vmem>>, vector<16x8xf32>,
    %69 = vector.extract_strided_slice %6 {offsets = [0, 24], sizes = [16, 8], strides = [1, 1]} : vector<16x32xf32> to vector<16x8xf32>
    %70 = vector.shape_cast %69 : vector<16x8xf32> to vector<2x8x8xf32>
    %71 = vector.extract_strided_slice %7 {offsets = [0, 24], sizes = [16, 8], strides = [1, 1]} : vector<16x32xf32> to vector<16x8xf32>
    %72 = vector.shape_cast %71 : vector<16x8xf32> to vector<2x8x8xf32>
    %73 = vector.extract_strided_slice %8 {offsets = [0, 24], sizes = [16, 8], strides = [1, 1]} : vector<16x32xf32> to vector<16x8xf32>
    %74 = vector.shape_cast %73 : vector<16x8xf32> to vector<2x8x8xf32>
    "tpu.trace_start"() <{level = 10 : i32, message = "bqd,bkd->bqk"}> : () -> ()
    %cst_21 = arith.constant dense<0.000000e+00> : vector<2x8x8xf32>
    %75 = tpu.matmul %70, %72, %cst_21 {dimension_numbers = #tpu.dot_dimension_numbers<[2], [2], [1], [1], [0, 0, 0, 1, 1, 1], [0], [0]>} : vector<2x8x8xf32>, vector<2x8x8xf32>, vector<2x8x8xf32> -> vector<2x8x8xf32>
    "tpu.trace_stop"() : () -> ()
    %cst_22 = arith.constant dense<0xFF800000> : vector<2x8xf32>
    %76 = vector.multi_reduction <maximumf>, %75, %cst_22 [2] : vector<2x8x8xf32> to vector<2x8xf32>
    %77 = vector.shape_cast %76 : vector<2x8xf32> to vector<2x8x1xf32>
    %78 = vector.broadcast %77 : vector<2x8x1xf32> to vector<2x8x8xf32>
    %79 = arith.subf %75, %78 : vector<2x8x8xf32>
    %80 = math.exp %79 : vector<2x8x8xf32>
    %cst_23 = arith.constant dense<0.000000e+00> : vector<2x8xf32>
    %81 = vector.multi_reduction <add>, %80, %cst_23 [2] : vector<2x8x8xf32> to vector<2x8xf32>
    %82 = vector.shape_cast %81 : vector<2x8xf32> to vector<2x8x1xf32>
    %83 = tpu.reciprocal %82 {approx = true} : vector<2x8x1xf32> -> vector<2x8x1xf32>
    %84 = vector.broadcast %83 : vector<2x8x1xf32> to vector<2x8x8xf32>
    %85 = arith.mulf %80, %84 : vector<2x8x8xf32>
    "tpu.trace_start"() <{level = 10 : i32, message = "bqk,bkd->bqd"}> : () -> ()
    %cst_24 = arith.constant dense<0.000000e+00> : vector<2x8x8xf32>
    %86 = tpu.matmul %85, %74, %cst_24 {dimension_numbers = #tpu.dot_dimension_numbers<[2], [1], [1], [2], [0, 0, 0, 1, 1, 2], [0], [0]>} : vector<2x8x8xf32>, vector<2x8x8xf32>, vector<2x8x8xf32> -> vector<2x8x8xf32>
    "tpu.trace_stop"() : () -> ()
    %87 = vector.shape_cast %86 : vector<2x8x8xf32> to vector<16x8xf32>
    %c0_25 = arith.constant 0 : index
    %c24 = arith.constant 24 : index
    %88 = vector.load %arg6[%c0_25, %c24] : memref<16x32xf32, #tpu.memory_space<vmem>>, vector<16x8xf32>
    tpu.vector_store %arg6[%c0_25, %c24], %87 {strides = array<i32>} : memref<16x32xf32, #tpu.memory_space<vmem>>, vector<16x8xf32>,
    %c0_26 = arith.constant 0 : index
    %c0_27 = arith.constant 0 : index
    %89 = vector.load %arg6[%c0_26, %c0_27] : memref<16x32xf32, #tpu.memory_space<vmem>>, vector<16x32xf32>
    %c0_28 = arith.constant 0 : index
    %c0_29 = arith.constant 0 : index
    %90 = vector.load %arg3[%c0_28, %c0_29] : memref<32x32xf32, #tpu.memory_space<vmem>>, vector<32x32xf32>
    %cst_30 = arith.constant dense<0.000000e+00> : vector<16x32xf32>
    %91 = tpu.matmul %89, %90, %cst_30 {dimension_numbers = #tpu.dot_dimension_numbers<[1], [0], [0], [1], [0, 0, 1, 1], [], []>} : vector<16x32xf32>, vector<32x32xf32>, vector<16x32xf32> -> vector<16x32xf32>
    %c0_31 = arith.constant 0 : index
    %c0_32 = arith.constant 0 : index
    %92 = vector.load %arg4[%c0_31, %c0_32] : memref<1x32xf32, #tpu.memory_space<vmem>>, vector<1x32xf32>
    %93 = vector.broadcast %92 : vector<1x32xf32> to vector<16x32xf32>
    %94 = arith.addf %91, %93 : vector<16x32xf32>
    %95 = vector.shape_cast %94 : vector<16x32xf32> to vector<2x8x32xf32>
    %c0_33 = arith.constant 0 : index
    %c0_34 = arith.constant 0 : index
    %c0_35 = arith.constant 0 : index
    %96 = vector.load %arg5[%c0_33, %c0_34, %c0_35] : memref<2x8x32xf32, #tpu.memory_space<vmem>>, vector<2x8x32xf32>
    tpu.vector_store %arg5[%c0_33, %c0_34, %c0_35], %95 {strides = array<i32>} : memref<2x8x32xf32, #tpu.memory_space<vmem>>, vector<2x8x32xf32>,
    return
  }
  func.func @transform_0(%arg0: i32) -> (i32, i32, i32) {
    %c0_i32 = arith.constant 0 : i32
    %c0_i32_0 = arith.constant 0 : i32
    %c0_i32_1 = arith.constant 0 : i32
    return %arg0, %c0_i32, %c0_i32_0 : i32, i32, i32
  }
  func.func @transform_1(%arg0: i32) -> (i32, i32) {
    %c0_i32 = arith.constant 0 : i32
    %c0_i32_0 = arith.constant 0 : i32
    %c0_i32_1 = arith.constant 0 : i32
    return %c0_i32, %c0_i32_0 : i32, i32
  }
  func.func @transform_2(%arg0: i32) -> (i32, i32) {
    %c0_i32 = arith.constant 0 : i32
    %c0_i32_0 = arith.constant 0 : i32
    %c0_i32_1 = arith.constant 0 : i32
    return %c0_i32, %c0_i32_0 : i32, i32
  }
  func.func @transform_3(%arg0: i32) -> (i32, i32) {
    %c0_i32 = arith.constant 0 : i32
    %c0_i32_0 = arith.constant 0 : i32
    %c0_i32_1 = arith.constant 0 : i32
    return %c0_i32, %c0_i32_0 : i32, i32
  }
  func.func @transform_4(%arg0: i32) -> (i32, i32, i32) {
    %c0_i32 = arith.constant 0 : i32
    %c0_i32_0 = arith.constant 0 : i32
    %c0_i32_1 = arith.constant 0 : i32
    return %arg0, %c0_i32, %c0_i32_0 : i32, i32, i32
  }
}

</mosaic_0001>

<llo_original>
// kernel: tpu_custom_call.1
$region0: #{tpu_custom_call.1}
  #allocation0 [shape = 'u32[]', space=smem, size = 0x4, offset = 0x4, fixed_abs, tag = 'smem constant byte address 0x4 - core index']
  #allocation1 [shape = 'u32[72,128]{1,0:T(1,128)}', space=vmem, size = 0x9000, scoped, tag = 'internal scratch']
  #allocation2 [shape = 'f32[16,32]{1,0:T(8,128)}', space=vmem, size = 0x2000, scoped, tag = 'scratch operand']
  %s0 = inlined_call_operand.hbm [shape: f32[2,8,32], index: 0, kind: input, shape index: {}]
  %s1 = inlined_call_operand.hbm [shape: f32[32,96], index: 1, kind: input, shape index: {}]
  %s2 = inlined_call_operand.hbm [shape: f32[32,32], index: 2, kind: input, shape index: {}]
  %s3 = inlined_call_operand.vmem [shape: f32[1,32], index: 3, kind: input, shape index: {}]
  %s4 = inlined_call_operand.hbm [shape: f32[2,8,32], index: 4, kind: output, shape index: {}]
  %s5 = sld [smem:[#allocation0]]
  $region38: #{tpu_custom_call.1} parent=0
    _
  %s7 = ssub.s32 1, %s5
  %s8 = scalar_select 0, %s7, %s5
  $region1: #{tpu_custom_call.1} parent=0
    #allocation3 [shape = 'u8[8192]{0}', space=vmem, size = 0x2000, scoped, tag = 'input window, operand 0, single buffered']
    #allocation4 [shape = 's32[1]{0}', space=sflag, size = 0x4, scoped, tag = 'scoped memory for tpu_custom_call.1']
    #allocation5 [shape = 's32[1]{0}', space=sflag, size = 0x4, scoped, tag = 'scoped memory for tpu_custom_call.1']
    #allocation6 [shape = 'u8[16384]{0}', space=vmem, size = 0x4000, scoped, tag = 'input window, operand 1, single buffered']
    #allocation7 [shape = 's32[1]{0}', space=sflag, size = 0x4, scoped, tag = 'scoped memory for tpu_custom_call.1']
    #allocation8 [shape = 'u8[16384]{0}', space=vmem, size = 0x4000, scoped, tag = 'input window, operand 2, single buffered']
    #allocation9 [shape = 'u8[8192]{0}', space=vmem, size = 0x2000, scoped, tag = 'output window, operand 0, single buffered']
    %9 = vsyncpa [#allocation4], 0
    %10 = vsyncpa [#allocation7], 0
    %11 = vsyncpa [#allocation5], 0
    // Predicated region
    $region2: #{tpu_custom_call.1} parent=1 // pred_check
      _
    $region3: #{tpu_custom_call.1} parent=1 // pred_check_branch
      %13 = sbr.rel (0) target = $region5
    $region4: #{tpu_custom_call.1} parent=1 // pred_region
      %15 = vsyncadd [#allocation4], 0
      %s16 = sshll.u32 %s0, 4
      %s17 = int_to_ptr.hbm [resolvable:$true] %s16
      %s18 = sshll.u32 [#allocation3], 4
      %s19 = int_to_ptr.vmem [resolvable:$true] %s18
      %24 = dma.hbm_to_vmem [thread:$0]  %s17, 256, %s19, [#allocation4], 128, 128, 8
    $region5: #{tpu_custom_call.1} parent=1 // pred_fallthru
      _
    // Predicated region
    $region6: #{tpu_custom_call.1} parent=1 // pred_check
      _
    $region7: #{tpu_custom_call.1} parent=1 // pred_check_branch
      %26 = sbr.rel (0) target = $region9
    $region8: #{tpu_custom_call.1} parent=1 // pred_region
      %28 = vsyncadd [#allocation7], 0
      %s29 = sshll.u32 %s1, 4
      %s30 = int_to_ptr.hbm [resolvable:$true] %s29
      %s31 = sshll.u32 [#allocation6], 4
      %s32 = int_to_ptr.vmem [resolvable:$true] %s31
      %37 = dma.hbm_to_vmem [thread:$0]  %s30, 512, %s32, [#allocation7], 128, 128, 8
    $region9: #{tpu_custom_call.1} parent=1 // pred_fallthru
      _
    // Predicated region
    $region10: #{tpu_custom_call.1} parent=1 // pred_check
      _
    $region11: #{tpu_custom_call.1} parent=1 // pred_check_branch
      %39 = sbr.rel (0) target = $region13
    $region12: #{tpu_custom_call.1} parent=1 // pred_region
      %41 = vsyncadd [#allocation7], 0
      %s42 = sshll.u32 %s2, 4
      %s43 = int_to_ptr.hbm [resolvable:$true] %s42
      %s44 = sshll.u32 [#allocation8], 4
      %s45 = int_to_ptr.vmem [resolvable:$true] %s44
      %50 = dma.hbm_to_vmem [thread:$0]  %s43, 512, %s45, [#allocation7], 128, 128, 8
    $region13: #{tpu_custom_call.1} parent=1 // pred_fallthru
      _
    // Predicated region
    $region14: #{tpu_custom_call.1} parent=1 // pred_check
      _
    $region15: #{tpu_custom_call.1} parent=1 // pred_check_branch
      %52 = sbr.rel (0) target = $region17
    $region16: #{tpu_custom_call.1} parent=1 // pred_region
      _
    $region17: #{tpu_custom_call.1} parent=1 // pred_fallthru
      _
    // Predicated region
    $region18: #{tpu_custom_call.1} parent=1 // pred_check
      _
    $region19: #{tpu_custom_call.1} parent=1 // pred_check_branch
      %54 = sbr.rel (0) target = $region21
    $region20: #{tpu_custom_call.1} parent=1 // pred_region
      %56 = dma.done [#allocation4], 256
    $region21: #{tpu_custom_call.1} parent=1 // pred_fallthru
      _
    // Predicated region
    $region22: #{tpu_custom_call.1} parent=1 // pred_check
      _
    $region23: #{tpu_custom_call.1} parent=1 // pred_check_branch
      %58 = sbr.rel (0) target = $region25
    $region24: #{tpu_custom_call.1} parent=1 // pred_region
      %60 = dma.done [#allocation7], 512
    $region25: #{tpu_custom_call.1} parent=1 // pred_fallthru
      _
    // Predicated region
    $region26: #{tpu_custom_call.1} parent=1 // pred_check
      _
    $region27: #{tpu_custom_call.1} parent=1 // pred_check_branch
      %62 = sbr.rel (0) target = $region29
    $region28: #{tpu_custom_call.1} parent=1 // pred_region
      %64 = dma.done [#allocation7], 512
    $region29: #{tpu_custom_call.1} parent=1 // pred_fallthru
      _
    %v65 = vld [vmem:[#allocation3] sm:$0xff]
    %v66 = vld [vmem:[#allocation3 + $0x8] sm:$0xff]
    %v67 = vld [vmem:[#allocation6] sm:$0xff]
    %v68 = vld [vmem:[#allocation6 + $0x8] sm:$0xff]
    %v69 = vld [vmem:[#allocation6 + $0x10] sm:$0xff]
    %v70 = vld [vmem:[#allocation6 + $0x18] sm:$0xff]
    %vm71 = vcmask 261120
    %v73 = vsel %vm71, %v65, 0
    %v76 = vsel %vm71, %v66, 0
    %78 = vmatpush.msra.mxu0 0.0
    %79 = vmatpush.msra.mxu0 0.0
    %80 = vmatpush.msra.mxu0 0.0
    %81 = vmatpush.msra.mxu0 0.0
    %82 = vmatpush.msra.mxu0 0.0
    %83 = vmatpush.msra.mxu0 0.0
    %84 = vmatpush.msra.mxu0 0.0
    %85 = vmatpush.msra.mxu0 0.0
    %86 = vmatpush.msra.mxu0 0.0
    %87 = vmatpush.msra.mxu0 0.0
    %88 = vmatpush.msra.mxu0 0.0
    %89 = vmatpush.msra.mxu0 0.0
    %90 = vmatpush.msra.mxu0 %v70
    %91 = vmatpush.msra.mxu0 %v69
    %92 = vmatpush.msra.mxu0 %v68
    %93 = vmatpush.msra.mxu0 %v67
    %94 = vmatmul.f32.gmra.mxu0 %v73
    %v95 = vpop.f32.mrf.mxu0
    %v96 = vadd.f32 0.0, %v95
    %97 = vmatmul.f32.gmra.mxu0 %v76
    %v98 = vpop.f32.mrf.mxu0
    %v99 = vadd.f32 0.0, %v98
    %100 = vdwg.mxu0
    %v101 = vmul.f32 %v96, 0.35355338
    %v102 = vmul.f32 %v99, 0.35355338
    %104 = vrot.lane.b32.xlu0 %v96, 96
    %v105 = vpop.permute.xlu0 %104
    %vm106 = vcmask 64512
    %v108 = vsel %vm106, %v101, 0
    %v110 = vsel %vm106, %v105, 0
    %112 = vmatpush.xpose.msra.mxu0 0.0
    %113 = vmatpush.xpose.msra.mxu0 0.0
    %114 = vmatpush.xpose.msra.mxu0 0.0
    %115 = vmatpush.xpose.msra.mxu0 0.0
    %116 = vmatpush.xpose.msra.mxu0 0.0
    %117 = vmatpush.xpose.msra.mxu0 0.0
    %118 = vmatpush.xpose.msra.mxu0 0.0
    %119 = vmatpush.xpose.msra.mxu0 0.0
    %120 = vmatpush.xpose.msra.mxu0 0.0
    %121 = vmatpush.xpose.msra.mxu0 0.0
    %122 = vmatpush.xpose.msra.mxu0 0.0
    %123 = vmatpush.xpose.msra.mxu0 0.0
    %124 = vmatpush.xpose.msra.mxu0 0.0
    %125 = vmatpush.xpose.msra.mxu0 0.0
    %126 = vmatpush.xpose.msra.mxu0 0.0
    %127 = vmatpush.xpose.msra.mxu0 %v110
    %128 = vmatmul.f32.gmra.mxu0 %v108
    %v129 = vpop.f32.mrf.mxu0
    %v130 = vadd.f32 0.0, %v129
    %131 = vdwg.mxu0
    %133 = vrot.lane.b32.xlu0 %v99, 96
    %v134 = vpop.permute.xlu0 %133
    %v136 = vsel %vm106, %v102, 0
    %v138 = vsel %vm106, %v134, 0
    %140 = vmatpush.xpose.msra.mxu0 0.0
    %141 = vmatpush.xpose.msra.mxu0 0.0
    %142 = vmatpush.xpose.msra.mxu0 0.0
    %143 = vmatpush.xpose.msra.mxu0 0.0
    %144 = vmatpush.xpose.msra.mxu0 0.0
    %145 = vmatpush.xpose.msra.mxu0 0.0
    %146 = vmatpush.xpose.msra.mxu0 0.0
    %147 = vmatpush.xpose.msra.mxu0 0.0
    %148 = vmatpush.xpose.msra.mxu0 0.0
    %149 = vmatpush.xpose.msra.mxu0 0.0
    %150 = vmatpush.xpose.msra.mxu0 0.0
    %151 = vmatpush.xpose.msra.mxu0 0.0
    %152 = vmatpush.xpose.msra.mxu0 0.0
    %153 = vmatpush.xpose.msra.mxu0 0.0
    %154 = vmatpush.xpose.msra.mxu0 0.0
    %155 = vmatpush.xpose.msra.mxu0 %v138
    %156 = vmatmul.f32.gmra.mxu0 %v136
    %v157 = vpop.f32.mrf.mxu0
    %v158 = vadd.f32 0.0, %v157
    %159 = vdwg.mxu0
    %v160 = vsel %vm106, %v130, -inf
    %161 = vmax.xlane.f32.xlu0 %v160
    %v162 = vpop.xlane.xlu0 %161
    %v163 = vsel %vm106, %v158, -inf
    %164 = vmax.xlane.f32.xlu0 %v163
    %v165 = vpop.xlane.xlu0 %164
    %v166 = vsub.f32 %v130, %v162
    %v167 = vsub.f32 %v158, %v165
    %v168 = vmul.f32 %v166, 1.442695
    %v169 = vpow.pop %v168
    %v170 = vmul.f32 %v167, 1.442695
    %v171 = vpow.pop %v170
    %v172 = vsel %vm106, %v169, 0.0
    %173 = vadd.xlane.f32.xlu0 %v172
    %v174 = vpop.xlane.xlu0 %173
    %v175 = vsel %vm106, %v171, 0.0
    %176 = vadd.xlane.f32.xlu0 %v175
    %v177 = vpop.xlane.xlu0 %176
    %v178 = vrcp.pop %v174
    %v179 = vrcp.pop %v177
    %v180 = vmul.f32 %v169, %v178
    %v181 = vmul.f32 %v171, %v179
    %182 = vrot.lane.b32.xlu0 %v96, 64
    %v183 = vpop.permute.xlu0 %182
    %v186 = vsel %vm106, %v180, 0
    %188 = vmatpush.msra.mxu0 0.0
    %189 = vmatpush.msra.mxu0 0.0
    %190 = vmatpush.msra.mxu0 0.0
    %191 = vmatpush.msra.mxu0 0.0
    %192 = vmatpush.msra.mxu0 0.0
    %193 = vmatpush.msra.mxu0 0.0
    %194 = vmatpush.msra.mxu0 0.0
    %195 = vmatpush.msra.mxu0 0.0
    %196 = vmatpush.msra.mxu0 0.0
    %197 = vmatpush.msra.mxu0 0.0
    %198 = vmatpush.msra.mxu0 0.0
    %199 = vmatpush.msra.mxu0 0.0
    %200 = vmatpush.msra.mxu0 0.0
    %201 = vmatpush.msra.mxu0 0.0
    %202 = vmatpush.msra.mxu0 0.0
    %203 = vmatpush.msra.mxu0 %v183
    %204 = vmatmul.f32.gmra.mxu0 %v186
    %v205 = vpop.f32.mrf.mxu0
    %v206 = vadd.f32 0.0, %v205
    %207 = vdwg.mxu0
    %208 = vrot.lane.b32.xlu0 %v99, 64
    %v209 = vpop.permute.xlu0 %208
    %v212 = vsel %vm106, %v181, 0
    %214 = vmatpush.msra.mxu0 0.0
    %215 = vmatpush.msra.mxu0 0.0
    %216 = vmatpush.msra.mxu0 0.0
    %217 = vmatpush.msra.mxu0 0.0
    %218 = vmatpush.msra.mxu0 0.0
    %219 = vmatpush.msra.mxu0 0.0
    %220 = vmatpush.msra.mxu0 0.0
    %221 = vmatpush.msra.mxu0 0.0
    %222 = vmatpush.msra.mxu0 0.0
    %223 = vmatpush.msra.mxu0 0.0
    %224 = vmatpush.msra.mxu0 0.0
    %225 = vmatpush.msra.mxu0 0.0
    %226 = vmatpush.msra.mxu0 0.0
    %227 = vmatpush.msra.mxu0 0.0
    %228 = vmatpush.msra.mxu0 0.0
    %229 = vmatpush.msra.mxu0 %v209
    %230 = vmatmul.f32.gmra.mxu0 %v212
    %v231 = vpop.f32.mrf.mxu0
    %v232 = vadd.f32 0.0, %v231
    %233 = vdwg.mxu0
    %234 = vst.msk [vmem:[#allocation2] sm:$0xff] %vm106, %v206
    %235 = vst.msk [vmem:[#allocation2 + $0x8] sm:$0xff] %vm106, %v232
    %236 = vrot.lane.b32.xlu0 %v101, 120
    %v237 = vpop.permute.xlu0 %236
    %238 = vrot.lane.b32.xlu0 %v96, 88
    %v239 = vpop.permute.xlu0 %238
    %v240 = vsel %vm106, %v237, 0
    %v242 = vsel %vm106, %v239, 0
    %244 = vmatpush.xpose.msra.mxu0 0.0
    %245 = vmatpush.xpose.msra.mxu0 0.0
    %246 = vmatpush.xpose.msra.mxu0 0.0
    %247 = vmatpush.xpose.msra.mxu0 0.0
    %248 = vmatpush.xpose.msra.mxu0 0.0
    %249 = vmatpush.xpose.msra.mxu0 0.0
    %250 = vmatpush.xpose.msra.mxu0 0.0
    %251 = vmatpush.xpose.msra.mxu0 0.0
    %252 = vmatpush.xpose.msra.mxu0 0.0
    %253 = vmatpush.xpose.msra.mxu0 0.0
    %254 = vmatpush.xpose.msra.mxu0 0.0
    %255 = vmatpush.xpose.msra.mxu0 0.0
    %256 = vmatpush.xpose.msra.mxu0 0.0
    %257 = vmatpush.xpose.msra.mxu0 0.0
    %258 = vmatpush.xpose.msra.mxu0 0.0
    %259 = vmatpush.xpose.msra.mxu0 %v242
    %260 = vmatmul.f32.gmra.mxu0 %v240
    %v261 = vpop.f32.mrf.mxu0
    %v262 = vadd.f32 0.0, %v261
    %263 = vdwg.mxu0
    %264 = vrot.lane.b32.xlu0 %v102, 120
    %v265 = vpop.permute.xlu0 %264
    %266 = vrot.lane.b32.xlu0 %v99, 88
    %v267 = vpop.permute.xlu0 %266
    %v268 = vsel %vm106, %v265, 0
    %v270 = vsel %vm106, %v267, 0
    %272 = vmatpush.xpose.msra.mxu0 0.0
    %273 = vmatpush.xpose.msra.mxu0 0.0
    %274 = vmatpush.xpose.msra.mxu0 0.0
    %275 = vmatpush.xpose.msra.mxu0 0.0
    %276 = vmatpush.xpose.msra.mxu0 0.0
    %277 = vmatpush.xpose.msra.mxu0 0.0
    %278 = vmatpush.xpose.msra.mxu0 0.0
    %279 = vmatpush.xpose.msra.mxu0 0.0
    %280 = vmatpush.xpose.msra.mxu0 0.0
    %281 = vmatpush.xpose.msra.mxu0 0.0
    %282 = vmatpush.xpose.msra.mxu0 0.0
    %283 = vmatpush.xpose.msra.mxu0 0.0
    %284 = vmatpush.xpose.msra.mxu0 0.0
    %285 = vmatpush.xpose.msra.mxu0 0.0
    %286 = vmatpush.xpose.msra.mxu0 0.0
    %287 = vmatpush.xpose.msra.mxu0 %v270
    %288 = vmatmul.f32.gmra.mxu0 %v268
    %v289 = vpop.f32.mrf.mxu0
    %v290 = vadd.f32 0.0, %v289
    %291 = vdwg.mxu0
    %v292 = vsel %vm106, %v262, -inf
    %293 = vmax.xlane.f32.xlu0 %v292
    %v294 = vpop.xlane.xlu0 %293
    %v295 = vsel %vm106, %v290, -inf
    %296 = vmax.xlane.f32.xlu0 %v295
    %v297 = vpop.xlane.xlu0 %296
    %v298 = vsub.f32 %v262, %v294
    %v299 = vsub.f32 %v290, %v297
    %v300 = vmul.f32 %v298, 1.442695
    %v301 = vpow.pop %v300
    %v302 = vmul.f32 %v299, 1.442695
    %v303 = vpow.pop %v302
    %v304 = vsel %vm106, %v301, 0.0
    %305 = vadd.xlane.f32.xlu0 %v304
    %v306 = vpop.xlane.xlu0 %305
    %v307 = vsel %vm106, %v303, 0.0
    %308 = vadd.xlane.f32.xlu0 %v307
    %v309 = vpop.xlane.xlu0 %308
    %v310 = vrcp.pop %v306
    %v311 = vrcp.pop %v309
    %v312 = vmul.f32 %v301, %v310
    %v313 = vmul.f32 %v303, %v311
    %314 = vrot.lane.b32.xlu0 %v96, 56
    %v315 = vpop.permute.xlu0 %314
    %v318 = vsel %vm106, %v312, 0
    %320 = vmatpush.msra.mxu0 0.0
    %321 = vmatpush.msra.mxu0 0.0
    %322 = vmatpush.msra.mxu0 0.0
    %323 = vmatpush.msra.mxu0 0.0
    %324 = vmatpush.msra.mxu0 0.0
    %325 = vmatpush.msra.mxu0 0.0
    %326 = vmatpush.msra.mxu0 0.0
    %327 = vmatpush.msra.mxu0 0.0
    %328 = vmatpush.msra.mxu0 0.0
    %329 = vmatpush.msra.mxu0 0.0
    %330 = vmatpush.msra.mxu0 0.0
    %331 = vmatpush.msra.mxu0 0.0
    %332 = vmatpush.msra.mxu0 0.0
    %333 = vmatpush.msra.mxu0 0.0
    %334 = vmatpush.msra.mxu0 0.0
    %335 = vmatpush.msra.mxu0 %v315
    %336 = vmatmul.f32.gmra.mxu0 %v318
    %v337 = vpop.f32.mrf.mxu0
    %v338 = vadd.f32 0.0, %v337
    %339 = vdwg.mxu0
    %340 = vrot.lane.b32.xlu0 %v99, 56
    %v341 = vpop.permute.xlu0 %340
    %v344 = vsel %vm106, %v313, 0
    %346 = vmatpush.msra.mxu0 0.0
    %347 = vmatpush.msra.mxu0 0.0
    %348 = vmatpush.msra.mxu0 0.0
    %349 = vmatpush.msra.mxu0 0.0
    %350 = vmatpush.msra.mxu0 0.0
    %351 = vmatpush.msra.mxu0 0.0
    %352 = vmatpush.msra.mxu0 0.0
    %353 = vmatpush.msra.mxu0 0.0
    %354 = vmatpush.msra.mxu0 0.0
    %355 = vmatpush.msra.mxu0 0.0
    %356 = vmatpush.msra.mxu0 0.0
    %357 = vmatpush.msra.mxu0 0.0
    %358 = vmatpush.msra.mxu0 0.0
    %359 = vmatpush.msra.mxu0 0.0
    %360 = vmatpush.msra.mxu0 0.0
    %361 = vmatpush.msra.mxu0 %v341
    %362 = vmatmul.f32.gmra.mxu0 %v344
    %v363 = vpop.f32.mrf.mxu0
    %v364 = vadd.f32 0.0, %v363
    %365 = vdwg.mxu0
    %368 = vrot.lane.b32.xlu0 %v338, 8
    %v369 = vpop.permute.xlu0 %368
    %370 = vrot.lane.b32.xlu0 %v364, 8
    %v371 = vpop.permute.xlu0 %370
    %vm374 = vcmask 130112
    %375 = vst.msk [vmem:[#allocation2] sm:$0xff] %vm374, %v369
    %376 = vst.msk [vmem:[#allocation2 + $0x8] sm:$0xff] %vm374, %v371
    %377 = vrot.lane.b32.xlu0 %v101, 112
    %v378 = vpop.permute.xlu0 %377
    %379 = vrot.lane.b32.xlu0 %v96, 80
    %v380 = vpop.permute.xlu0 %379
    %v381 = vsel %vm106, %v378, 0
    %v383 = vsel %vm106, %v380, 0
    %385 = vmatpush.xpose.msra.mxu0 0.0
    %386 = vmatpush.xpose.msra.mxu0 0.0
    %387 = vmatpush.xpose.msra.mxu0 0.0
    %388 = vmatpush.xpose.msra.mxu0 0.0
    %389 = vmatpush.xpose.msra.mxu0 0.0
    %390 = vmatpush.xpose.msra.mxu0 0.0
    %391 = vmatpush.xpose.msra.mxu0 0.0
    %392 = vmatpush.xpose.msra.mxu0 0.0
    %393 = vmatpush.xpose.msra.mxu0 0.0
    %394 = vmatpush.xpose.msra.mxu0 0.0
    %395 = vmatpush.xpose.msra.mxu0 0.0
    %396 = vmatpush.xpose.msra.mxu0 0.0
    %397 = vmatpush.xpose.msra.mxu0 0.0
    %398 = vmatpush.xpose.msra.mxu0 0.0
    %399 = vmatpush.xpose.msra.mxu0 0.0
    %400 = vmatpush.xpose.msra.mxu0 %v383
    %401 = vmatmul.f32.gmra.mxu0 %v381
    %v402 = vpop.f32.mrf.mxu0
    %v403 = vadd.f32 0.0, %v402
    %404 = vdwg.mxu0
    %405 = vrot.lane.b32.xlu0 %v102, 112
    %v406 = vpop.permute.xlu0 %405
    %407 = vrot.lane.b32.xlu0 %v99, 80
    %v408 = vpop.permute.xlu0 %407
    %v409 = vsel %vm106, %v406, 0
    %v411 = vsel %vm106, %v408, 0
    %413 = vmatpush.xpose.msra.mxu0 0.0
    %414 = vmatpush.xpose.msra.mxu0 0.0
    %415 = vmatpush.xpose.msra.mxu0 0.0
    %416 = vmatpush.xpose.msra.mxu0 0.0
    %417 = vmatpush.xpose.msra.mxu0 0.0
    %418 = vmatpush.xpose.msra.mxu0 0.0
    %419 = vmatpush.xpose.msra.mxu0 0.0
    %420 = vmatpush.xpose.msra.mxu0 0.0
    %421 = vmatpush.xpose.msra.mxu0 0.0
    %422 = vmatpush.xpose.msra.mxu0 0.0
    %423 = vmatpush.xpose.msra.mxu0 0.0
    %424 = vmatpush.xpose.msra.mxu0 0.0
    %425 = vmatpush.xpose.msra.mxu0 0.0
    %426 = vmatpush.xpose.msra.mxu0 0.0
    %427 = vmatpush.xpose.msra.mxu0 0.0
    %428 = vmatpush.xpose.msra.mxu0 %v411
    %429 = vmatmul.f32.gmra.mxu0 %v409
    %v430 = vpop.f32.mrf.mxu0
    %v431 = vadd.f32 0.0, %v430
    %432 = vdwg.mxu0
    %v433 = vsel %vm106, %v403, -inf
    %434 = vmax.xlane.f32.xlu0 %v433
    %v435 = vpop.xlane.xlu0 %434
    %v436 = vsel %vm106, %v431, -inf
    %437 = vmax.xlane.f32.xlu0 %v436
    %v438 = vpop.xlane.xlu0 %437
    %v439 = vsub.f32 %v403, %v435
    %v440 = vsub.f32 %v431, %v438
    %v441 = vmul.f32 %v439, 1.442695
    %v442 = vpow.pop %v441
    %v443 = vmul.f32 %v440, 1.442695
    %v444 = vpow.pop %v443
    %v445 = vsel %vm106, %v442, 0.0
    %446 = vadd.xlane.f32.xlu0 %v445
    %v447 = vpop.xlane.xlu0 %446
    %v448 = vsel %vm106, %v444, 0.0
    %449 = vadd.xlane.f32.xlu0 %v448
    %v450 = vpop.xlane.xlu0 %449
    %v451 = vrcp.pop %v447
    %v452 = vrcp.pop %v450
    %v453 = vmul.f32 %v442, %v451
    %v454 = vmul.f32 %v444, %v452
    %455 = vrot.lane.b32.xlu0 %v96, 48
    %v456 = vpop.permute.xlu0 %455
    %v459 = vsel %vm106, %v453, 0
    %461 = vmatpush.msra.mxu0 0.0
    %462 = vmatpush.msra.mxu0 0.0
    %463 = vmatpush.msra.mxu0 0.0
    %464 = vmatpush.msra.mxu0 0.0
    %465 = vmatpush.msra.mxu0 0.0
    %466 = vmatpush.msra.mxu0 0.0
    %467 = vmatpush.msra.mxu0 0.0
    %468 = vmatpush.msra.mxu0 0.0
    %469 = vmatpush.msra.mxu0 0.0
    %470 = vmatpush.msra.mxu0 0.0
    %471 = vmatpush.msra.mxu0 0.0
    %472 = vmatpush.msra.mxu0 0.0
    %473 = vmatpush.msra.mxu0 0.0
    %474 = vmatpush.msra.mxu0 0.0
    %475 = vmatpush.msra.mxu0 0.0
    %476 = vmatpush.msra.mxu0 %v456
    %477 = vmatmul.f32.gmra.mxu0 %v459
    %v478 = vpop.f32.mrf.mxu0
    %v479 = vadd.f32 0.0, %v478
    %480 = vdwg.mxu0
    %481 = vrot.lane.b32.xlu0 %v99, 48
    %v482 = vpop.permute.xlu0 %481
    %v485 = vsel %vm106, %v454, 0
    %487 = vmatpush.msra.mxu0 0.0
    %488 = vmatpush.msra.mxu0 0.0
    %489 = vmatpush.msra.mxu0 0.0
    %490 = vmatpush.msra.mxu0 0.0
    %491 = vmatpush.msra.mxu0 0.0
    %492 = vmatpush.msra.mxu0 0.0
    %493 = vmatpush.msra.mxu0 0.0
    %494 = vmatpush.msra.mxu0 0.0
    %495 = vmatpush.msra.mxu0 0.0
    %496 = vmatpush.msra.mxu0 0.0
    %497 = vmatpush.msra.mxu0 0.0
    %498 = vmatpush.msra.mxu0 0.0
    %499 = vmatpush.msra.mxu0 0.0
    %500 = vmatpush.msra.mxu0 0.0
    %501 = vmatpush.msra.mxu0 0.0
    %502 = vmatpush.msra.mxu0 %v482
    %503 = vmatmul.f32.gmra.mxu0 %v485
    %v504 = vpop.f32.mrf.mxu0
    %v505 = vadd.f32 0.0, %v504
    %506 = vdwg.mxu0
    %509 = vrot.lane.b32.xlu0 %v479, 16
    %v510 = vpop.permute.xlu0 %509
    %511 = vrot.lane.b32.xlu0 %v505, 16
    %v512 = vpop.permute.xlu0 %511
    %vm515 = vcmask 195712
    %516 = vst.msk [vmem:[#allocation2] sm:$0xff] %vm515, %v510
    %517 = vst.msk [vmem:[#allocation2 + $0x8] sm:$0xff] %vm515, %v512
    %518 = vrot.lane.b32.xlu0 %v101, 104
    %v519 = vpop.permute.xlu0 %518
    %520 = vrot.lane.b32.xlu0 %v96, 72
    %v521 = vpop.permute.xlu0 %520
    %v522 = vsel %vm106, %v519, 0
    %v524 = vsel %vm106, %v521, 0
    %526 = vmatpush.xpose.msra.mxu0 0.0
    %527 = vmatpush.xpose.msra.mxu0 0.0
    %528 = vmatpush.xpose.msra.mxu0 0.0
    %529 = vmatpush.xpose.msra.mxu0 0.0
    %530 = vmatpush.xpose.msra.mxu0 0.0
    %531 = vmatpush.xpose.msra.mxu0 0.0
    %532 = vmatpush.xpose.msra.mxu0 0.0
    %533 = vmatpush.xpose.msra.mxu0 0.0
    %534 = vmatpush.xpose.msra.mxu0 0.0
    %535 = vmatpush.xpose.msra.mxu0 0.0
    %536 = vmatpush.xpose.msra.mxu0 0.0
    %537 = vmatpush.xpose.msra.mxu0 0.0
    %538 = vmatpush.xpose.msra.mxu0 0.0
    %539 = vmatpush.xpose.msra.mxu0 0.0
    %540 = vmatpush.xpose.msra.mxu0 0.0
    %541 = vmatpush.xpose.msra.mxu0 %v524
    %542 = vmatmul.f32.gmra.mxu0 %v522
    %v543 = vpop.f32.mrf.mxu0
    %v544 = vadd.f32 0.0, %v543
    %545 = vdwg.mxu0
    %546 = vrot.lane.b32.xlu0 %v102, 104
    %v547 = vpop.permute.xlu0 %546
    %548 = vrot.lane.b32.xlu0 %v99, 72
    %v549 = vpop.permute.xlu0 %548
    %v550 = vsel %vm106, %v547, 0
    %v552 = vsel %vm106, %v549, 0
    %554 = vmatpush.xpose.msra.mxu0 0.0
    %555 = vmatpush.xpose.msra.mxu0 0.0
    %556 = vmatpush.xpose.msra.mxu0 0.0
    %557 = vmatpush.xpose.msra.mxu0 0.0
    %558 = vmatpush.xpose.msra.mxu0 0.0
    %559 = vmatpush.xpose.msra.mxu0 0.0
    %560 = vmatpush.xpose.msra.mxu0 0.0
    %561 = vmatpush.xpose.msra.mxu0 0.0
    %562 = vmatpush.xpose.msra.mxu0 0.0
    %563 = vmatpush.xpose.msra.mxu0 0.0
    %564 = vmatpush.xpose.msra.mxu0 0.0
    %565 = vmatpush.xpose.msra.mxu0 0.0
    %566 = vmatpush.xpose.msra.mxu0 0.0
    %567 = vmatpush.xpose.msra.mxu0 0.0
    %568 = vmatpush.xpose.msra.mxu0 0.0
    %569 = vmatpush.xpose.msra.mxu0 %v552
    %570 = vmatmul.f32.gmra.mxu0 %v550
    %v571 = vpop.f32.mrf.mxu0
    %v572 = vadd.f32 0.0, %v571
    %573 = vdwg.mxu0
    %v574 = vsel %vm106, %v544, -inf
    %575 = vmax.xlane.f32.xlu0 %v574
    %v576 = vpop.xlane.xlu0 %575
    %v577 = vsel %vm106, %v572, -inf
    %578 = vmax.xlane.f32.xlu0 %v577
    %v579 = vpop.xlane.xlu0 %578
    %v580 = vsub.f32 %v544, %v576
    %v581 = vsub.f32 %v572, %v579
    %v582 = vmul.f32 %v580, 1.442695
    %v583 = vpow.pop %v582
    %v584 = vmul.f32 %v581, 1.442695
    %v585 = vpow.pop %v584
    %v586 = vsel %vm106, %v583, 0.0
    %587 = vadd.xlane.f32.xlu0 %v586
    %v588 = vpop.xlane.xlu0 %587
    %v589 = vsel %vm106, %v585, 0.0
    %590 = vadd.xlane.f32.xlu0 %v589
    %v591 = vpop.xlane.xlu0 %590
    %v592 = vrcp.pop %v588
    %v593 = vrcp.pop %v591
    %v594 = vmul.f32 %v583, %v592
    %v595 = vmul.f32 %v585, %v593
    %596 = vrot.lane.b32.xlu0 %v96, 40
    %v597 = vpop.permute.xlu0 %596
    %v600 = vsel %vm106, %v594, 0
    %602 = vmatpush.msra.mxu0 0.0
    %603 = vmatpush.msra.mxu0 0.0
    %604 = vmatpush.msra.mxu0 0.0
    %605 = vmatpush.msra.mxu0 0.0
    %606 = vmatpush.msra.mxu0 0.0
    %607 = vmatpush.msra.mxu0 0.0
    %608 = vmatpush.msra.mxu0 0.0
    %609 = vmatpush.msra.mxu0 0.0
    %610 = vmatpush.msra.mxu0 0.0
    %611 = vmatpush.msra.mxu0 0.0
    %612 = vmatpush.msra.mxu0 0.0
    %613 = vmatpush.msra.mxu0 0.0
    %614 = vmatpush.msra.mxu0 0.0
    %615 = vmatpush.msra.mxu0 0.0
    %616 = vmatpush.msra.mxu0 0.0
    %617 = vmatpush.msra.mxu0 %v597
    %618 = vmatmul.f32.gmra.mxu0 %v600
    %v619 = vpop.f32.mrf.mxu0
    %v620 = vadd.f32 0.0, %v619
    %621 = vdwg.mxu0
    %622 = vrot.lane.b32.xlu0 %v99, 40
    %v623 = vpop.permute.xlu0 %622
    %v626 = vsel %vm106, %v595, 0
    %628 = vmatpush.msra.mxu0 0.0
    %629 = vmatpush.msra.mxu0 0.0
    %630 = vmatpush.msra.mxu0 0.0
    %631 = vmatpush.msra.mxu0 0.0
    %632 = vmatpush.msra.mxu0 0.0
    %633 = vmatpush.msra.mxu0 0.0
    %634 = vmatpush.msra.mxu0 0.0
    %635 = vmatpush.msra.mxu0 0.0
    %636 = vmatpush.msra.mxu0 0.0
    %637 = vmatpush.msra.mxu0 0.0
    %638 = vmatpush.msra.mxu0 0.0
    %639 = vmatpush.msra.mxu0 0.0
    %640 = vmatpush.msra.mxu0 0.0
    %641 = vmatpush.msra.mxu0 0.0
    %642 = vmatpush.msra.mxu0 0.0
    %643 = vmatpush.msra.mxu0 %v623
    %644 = vmatmul.f32.gmra.mxu0 %v626
    %v645 = vpop.f32.mrf.mxu0
    %v646 = vadd.f32 0.0, %v645
    %647 = vdwg.mxu0
    %650 = vrot.lane.b32.xlu0 %v620, 24
    %v651 = vpop.permute.xlu0 %650
    %652 = vrot.lane.b32.xlu0 %v646, 24
    %v653 = vpop.permute.xlu0 %652
    %vm656 = vcmask 261312
    %657 = vst.msk [vmem:[#allocation2] sm:$0xff] %vm656, %v651
    %658 = vst.msk [vmem:[#allocation2 + $0x8] sm:$0xff] %vm656, %v653
    %v659 = vld [vmem:[#allocation2] sm:$0xff]
    %v660 = vld [vmem:[#allocation2 + $0x8] sm:$0xff]
    %v661 = vld [vmem:[#allocation8] sm:$0xff]
    %v662 = vld [vmem:[#allocation8 + $0x8] sm:$0xff]
    %v663 = vld [vmem:[#allocation8 + $0x10] sm:$0xff]
    %v664 = vld [vmem:[#allocation8 + $0x18] sm:$0xff]
    %v665 = vld [vmem:[%s3] sm:$0x1]
    %v667 = vperm.slane %v665, 0
    %v670 = vsel %vm71, %v659, 0
    %v673 = vsel %vm71, %v660, 0
    %675 = vmatpush.msra.mxu0 0.0
    %676 = vmatpush.msra.mxu0 0.0
    %677 = vmatpush.msra.mxu0 0.0
    %678 = vmatpush.msra.mxu0 0.0
    %679 = vmatpush.msra.mxu0 0.0
    %680 = vmatpush.msra.mxu0 0.0
    %681 = vmatpush.msra.mxu0 0.0
    %682 = vmatpush.msra.mxu0 0.0
    %683 = vmatpush.msra.mxu0 0.0
    %684 = vmatpush.msra.mxu0 0.0
    %685 = vmatpush.msra.mxu0 0.0
    %686 = vmatpush.msra.mxu0 0.0
    %687 = vmatpush.msra.mxu0 %v664
    %688 = vmatpush.msra.mxu0 %v663
    %689 = vmatpush.msra.mxu0 %v662
    %690 = vmatpush.msra.mxu0 %v661
    %691 = vmatmul.f32.gmra.mxu0 %v670
    %v692 = vpop.f32.mrf.mxu0
    %v693 = vadd.f32 %v667, %v692
    %694 = vmatmul.f32.gmra.mxu0 %v673
    %v695 = vpop.f32.mrf.mxu0
    %v696 = vadd.f32 %v667, %v695
    %697 = vdwg.mxu0
    %698 = vst.msk [vmem:[#allocation9] sm:$0xff] %vm71, %v693
    %699 = vst.msk [vmem:[#allocation9 + $0x8] sm:$0xff] %vm71, %v696
    // Predicated region
    $region30: #{tpu_custom_call.1} parent=1 // pred_check
      _
    $region31: #{tpu_custom_call.1} parent=1 // pred_check_branch
      %701 = sbr.rel (0) target = $region33
    $region32: #{tpu_custom_call.1} parent=1 // pred_region
      %703 = vsyncadd [#allocation5], 0
      %s704 = sshll.u32 [#allocation9], 4
      %s705 = int_to_ptr.vmem [resolvable:$true] %s704
      %s706 = sshll.u32 %s4, 4
      %s707 = int_to_ptr.hbm [resolvable:$true] %s706
      %712 = dma.vmem_to_hbm [thread:$0]  %s705, 256, %s707, [#allocation5], 128, 128, 8
    $region33: #{tpu_custom_call.1} parent=1 // pred_fallthru
      _
    // Predicated region
    $region34: #{tpu_custom_call.1} parent=1 // pred_check
      _
    $region35: #{tpu_custom_call.1} parent=1 // pred_check_branch
      %714 = sbr.rel (0) target = $region37
    $region36: #{tpu_custom_call.1} parent=1 // pred_region
      %716 = dma.done [#allocation5], 256
    $region37: #{tpu_custom_call.1} parent=1 // pred_fallthru
      _
    %717 = vsyncpa [#allocation4], 1
    %718 = vsyncpa [#allocation7], 1
    %719 = vsyncpa [#allocation5], 1

</llo_original>
